<compile_context>
chip_gen: v6e
topology: v6e:2x2x1
jax: 0.10.0
libtpu: 0.0.40
codegen_flags: <defaults>
</compile_context>

<pallas_src>
import functools
import math

import jax
import jax.numpy as jnp
from jax.experimental import pallas as pl
from jax.experimental.pallas import tpu as pltpu

HALF_DIM = 16                                    # pos-emb dim fixed at 32 -> 16 sin + 16 cos
_NEG_SCALE = -math.log(10000.0) / (HALF_DIM - 1)
MAX_TB = 1024                                    # hard cap on batch-tile rows
VMEM_OUT_BUDGET = 8 * 1024 * 1024                # budget for double-buffered output blocks


def _round_up(x, m):
    return (x + m - 1) // m * m


def _cdiv(a, b):
    return (a + b - 1) // b


def time_mlp_kernel(t_ref, w_ref, b_ref, out_ref):
    # t_ref:   (TB, 1)   f32 timesteps (batch tile)
    # w_ref:   (32, dim) bf16 packed weight = weight.T  (rows 0:16 sin, 16:32 cos)
    # b_ref:   (1, dim)  f32 bias
    # out_ref: (TB, dim) output (f32 or bf16)
    # Sinusoidal frequencies generated on-chip: no extra input / DMA.
    idx = jax.lax.broadcasted_iota(jnp.int32, (1, HALF_DIM), 1).astype(jnp.float32)
    freqs = jnp.exp(idx * _NEG_SCALE)                                   # (1, 16)
    args = t_ref[...] * freqs                                           # (TB, 16)
    emb = jnp.concatenate([jnp.sin(args), jnp.cos(args)], axis=-1)      # (TB, 32) f32
    # Single MXU pass: bf16 operands, f32 accumulation.
    y = jnp.dot(emb.astype(jnp.bfloat16), w_ref[...],
                preferred_element_type=jnp.float32) + b_ref[...]        # (TB, dim) f32
    out_ref[...] = jnp.maximum(y, 0.2 * y).astype(out_ref.dtype)        # LeakyReLU(0.2)


def prepare_time_mlp_params(weight, bias):
    """One-time parameter prep (hoisted out of the per-step path).

    weight: (dim, 32) PyTorch nn.Linear layout.  bias: (dim,).
    Returns (w_packed (32, dim) bf16, b_packed (1, dim) f32).  No lane padding.
    """
    w_packed = weight.astype(jnp.float32).T.astype(jnp.bfloat16)   # (32, dim): [W_sin; W_cos]
    b_packed = bias.astype(jnp.float32).reshape(1, -1)             # (1, dim)
    return w_packed, b_packed


@functools.partial(jax.jit, static_argnames=("out_dtype",))
def time_mlp_apply(t, w_packed, b_packed, *, out_dtype=jnp.float32):
    """t: (B,) float timesteps.  Returns (B, dim) in out_dtype."""
    b_sz = t.shape[0]
    dim = w_packed.shape[1]
    out_bytes = jnp.dtype(out_dtype).itemsize
    g = 16 if out_bytes < 4 else 8                        # sublane packing granularity

    # Batch tiling: VMEM-budgeted cap, >=2 grid steps when possible (v7x has 2 TCs),
    # tile chosen to (nearly) divide round_up(B, g) to minimize padding waste.
    b_pad = _round_up(b_sz, g)
    tb_cap = max(g, min(MAX_TB, (VMEM_OUT_BUDGET // (2 * out_bytes * dim)) // g * g))
    n_tiles = max(2, _cdiv(b_pad, tb_cap))
    tb = min(tb_cap, _round_up(_cdiv(b_pad, n_tiles), g))
    b_pad = _round_up(b_pad, tb)

    t2 = t.astype(jnp.float32).reshape(b_sz, 1)
    if b_pad != b_sz:
        t2 = jnp.pad(t2, ((0, b_pad - b_sz), (0, 0)))

    # Explicit scoped-VMEM limit: double-buffered out + t blocks, resident weight/bias,
    # 2x headroom.  Kept well under v5e's 16 MiB default and v7x's 64 MiB physical.
    needed = (2 * tb * dim * out_bytes + 2 * tb * 4
              + 2 * (2 * HALF_DIM) * dim * 2 + 2 * dim * 4)
    vmem_limit = int(min(32 * 1024 * 1024, max(4 * 1024 * 1024, 2 * needed)))

    out = pl.pallas_call(
        time_mlp_kernel,
        out_shape=jax.ShapeDtypeStruct((b_pad, dim), out_dtype),
        grid=(b_pad // tb,),
        in_specs=[
            pl.BlockSpec((tb, 1), lambda i: (i, 0)),                 # timesteps, tiled on B
            pl.BlockSpec((2 * HALF_DIM, dim), lambda i: (0, 0)),     # packed weight (resident)
            pl.BlockSpec((1, dim), lambda i: (0, 0)),                # bias (resident)
        ],
        out_specs=pl.BlockSpec((tb, dim), lambda i: (i, 0)),
        compiler_params=pltpu.CompilerParams(
            dimension_semantics=("parallel",),
            vmem_limit_bytes=vmem_limit),
    )(t2, w_packed, b_packed)
    if b_pad != b_sz:
        out = out[:b_sz]
    return out


def time_mlp(t, weight, bias, out_dtype=jnp.float32):
    """Convenience one-shot wrapper (prep + apply)."""
    w_packed, b_packed = prepare_time_mlp_params(weight, bias)
    return time_mlp_apply(t, w_packed, b_packed, out_dtype=out_dtype)


def time_mlp_ref(t, weight, bias, matmul_dtype=jnp.float32):
    """Pure-JAX reference mirroring the PyTorch forward.

    matmul_dtype=jnp.bfloat16 mirrors the kernel's precision policy
    (f32 sin/cos, bf16 matmul operands, f32 accumulate + epilogue).
    """
    scale = math.log(10000.0) / (HALF_DIM - 1)
    freqs = jnp.exp(jnp.arange(HALF_DIM, dtype=jnp.float32) * -scale)
    args = t.astype(jnp.float32)[:, None] * freqs[None, :]
    emb = jnp.concatenate([jnp.sin(args), jnp.cos(args)], axis=-1)      # (B, 32)
    y = jnp.dot(emb.astype(matmul_dtype), weight.T.astype(matmul_dtype),
                preferred_element_type=jnp.float32) + bias.astype(jnp.float32)
    return jnp.where(y > 0, y, 0.2 * y)


if __name__ == "__main__":
    key = jax.random.PRNGKey(0)
    k_t, k_w, k_b, k_t2 = jax.random.split(key, 4)

    B = 8
    dim = 32  # hidden size of the timeMLP output

    # Deterministic "parameters" (PyTorch nn.Linear(32, dim) shapes).
    bound = 1.0 / math.sqrt(32.0)
    weight = jax.random.uniform(k_w, (dim, 32), jnp.float32, -bound, bound)
    bias = jax.random.uniform(k_b, (dim,), jnp.float32, -bound, bound)

    # Example timesteps.
    t = jax.random.uniform(k_t, (B,), jnp.float32, 0.0, 1000.0)

    # Parameter prep once (init-time); jitted apply is the per-step hot path.
    w_packed, b_packed = prepare_time_mlp_params(weight, bias)

    # f32 output path (matches the PyTorch module's output dtype).
    out = jax.block_until_ready(time_mlp_apply(t, w_packed, b_packed))
    assert out.shape == (B, dim) and out.dtype == jnp.float32

    # Tight check vs. a reference with the kernel's exact precision policy
    # (bf16 matmul operands, f32 accumulate), then sanity vs. full-f32 forward.
    ref_bf16 = time_mlp_ref(t, weight, bias, matmul_dtype=jnp.bfloat16)
    assert jnp.allclose(out, ref_bf16, atol=2e-3, rtol=2e-3), "mismatch vs bf16-policy reference"
    ref_f32 = time_mlp_ref(t, weight, bias, matmul_dtype=jnp.float32)
    assert jnp.allclose(out, ref_f32, atol=5e-2, rtol=5e-2), "mismatch vs f32 reference"

    # bf16 output fast path (halves HBM writeback; use when the consumer takes bf16).
    out_bf16 = jax.block_until_ready(
        time_mlp_apply(t, w_packed, b_packed, out_dtype=jnp.bfloat16))
    assert out_bf16.shape == (B, dim) and out_bf16.dtype == jnp.bfloat16
    assert jnp.allclose(out_bf16.astype(jnp.float32), ref_f32, atol=5e-2, rtol=5e-2), \
        "mismatch on bf16-output path"

    # Multi-step grid path (exercises >=2 parallel grid steps + batch padding/slice).
    B2 = 40
    t2 = jax.random.uniform(k_t2, (B2,), jnp.float32, 0.0, 1000.0)
    out2 = jax.block_until_ready(time_mlp_apply(t2, w_packed, b_packed))
    assert out2.shape == (B2, dim)
    assert jnp.allclose(out2, time_mlp_ref(t2, weight, bias, matmul_dtype=jnp.bfloat16),
                        atol=2e-3, rtol=2e-3), "mismatch on multi-tile path"

    print("KERNEL_OK")
</pallas_src>

<mosaic_0001>
module attributes {stable_mosaic.version = 11 : i64} {
  func.func @time_mlp_kernel(%arg0: i32, %arg1: memref<8x1xf32, #tpu.memory_space<vmem>>, %arg2: memref<32x32xbf16, #tpu.memory_space<vmem>>, %arg3: memref<1x32xf32, #tpu.memory_space<vmem>>, %arg4: memref<8x32xf32, #tpu.memory_space<vmem>>) attributes {dimension_semantics = [#tpu.dimension_semantics<parallel>], iteration_bounds = array<i64: 1>, scalar_prefetch = 0 : i64, scratch_operands = 0 : i64, tpu.core_type = #tpu.core_type<tc>, window_params = [{transform_indices = @transform_0, window_bounds = array<i64: 8, 1>}, {pipeline_mode = #tpu.pipeline_mode<synchronous>, transform_indices = @transform_1, window_bounds = array<i64: 32, 32>}, {pipeline_mode = #tpu.pipeline_mode<synchronous>, transform_indices = @transform_2, window_bounds = array<i64: 1, 32>}, {transform_indices = @transform_3, window_bounds = array<i64: 8, 32>}]} {
    %0 = tpu.iota {dimensions = array<i32: 1>} : vector<1x16xi32>
    %1 = arith.sitofp %0 : vector<1x16xi32> to vector<1x16xf32>
    %cst = arith.constant -0.614022672 : f32
    %2 = vector.broadcast %cst : f32 to vector<1x16xf32>
    %3 = arith.mulf %1, %2 : vector<1x16xf32>
    %4 = math.exp %3 : vector<1x16xf32>
    %c0 = arith.constant 0 : index
    %c0_0 = arith.constant 0 : index
    %5 = vector.load %arg1[%c0, %c0_0] : memref<8x1xf32, #tpu.memory_space<vmem>>, vector<8x1xf32>
    %6 = vector.broadcast %5 : vector<8x1xf32> to vector<8x16xf32>
    %7 = vector.broadcast %4 : vector<1x16xf32> to vector<8x16xf32>
    %8 = arith.mulf %6, %7 : vector<8x16xf32>
    %9 = math.sin %8 : vector<8x16xf32>
    %10 = math.cos %8 : vector<8x16xf32>
    %11 = tpu.concatenate %9, %10 in 1 : vector<8x16xf32>, vector<8x16xf32> -> vector<8x32xf32>
    %12 = arith.truncf %11 : vector<8x32xf32> to vector<8x32xbf16>
    %c0_1 = arith.constant 0 : index
    %c0_2 = arith.constant 0 : index
    %13 = vector.load %arg2[%c0_1, %c0_2] : memref<32x32xbf16, #tpu.memory_space<vmem>>, vector<32x32xbf16>
    %cst_3 = arith.constant dense<0.000000e+00> : vector<8x32xf32>
    %14 = tpu.matmul %12, %13, %cst_3 {dimension_numbers = #tpu.dot_dimension_numbers<[1], [0], [0], [1], [0, 0, 1, 1], [], []>} : vector<8x32xbf16>, vector<32x32xbf16>, vector<8x32xf32> -> vector<8x32xf32>
    %c0_4 = arith.constant 0 : index
    %c0_5 = arith.constant 0 : index
    %15 = vector.load %arg3[%c0_4, %c0_5] : memref<1x32xf32, #tpu.memory_space<vmem>>, vector<1x32xf32>
    %16 = vector.broadcast %15 : vector<1x32xf32> to vector<8x32xf32>
    %17 = arith.addf %14, %16 : vector<8x32xf32>
    %cst_6 = arith.constant 2.000000e-01 : f32
    %18 = vector.broadcast %cst_6 : f32 to vector<8x32xf32>
    %19 = arith.mulf %18, %17 : vector<8x32xf32>
    %20 = arith.maximumf %17, %19 : vector<8x32xf32>
    %c0_7 = arith.constant 0 : index
    %c0_8 = arith.constant 0 : index
    %21 = vector.load %arg4[%c0_7, %c0_8] : memref<8x32xf32, #tpu.memory_space<vmem>>, vector<8x32xf32>
    tpu.vector_store %arg4[%c0_7, %c0_8], %20 {strides = array<i32>} : memref<8x32xf32, #tpu.memory_space<vmem>>, vector<8x32xf32>,
    return
  }
  func.func @transform_0(%arg0: i32) -> (i32, i32) {
    %c0_i32 = arith.constant 0 : i32
    %c0_i32_0 = arith.constant 0 : i32
    return %arg0, %c0_i32 : i32, i32
  }
  func.func @transform_1(%arg0: i32) -> (i32, i32) {
    %c0_i32 = arith.constant 0 : i32
    %c0_i32_0 = arith.constant 0 : i32
    %c0_i32_1 = arith.constant 0 : i32
    return %c0_i32, %c0_i32_0 : i32, i32
  }
  func.func @transform_2(%arg0: i32) -> (i32, i32) {
    %c0_i32 = arith.constant 0 : i32
    %c0_i32_0 = arith.constant 0 : i32
    %c0_i32_1 = arith.constant 0 : i32
    return %c0_i32, %c0_i32_0 : i32, i32
  }
  func.func @transform_3(%arg0: i32) -> (i32, i32) {
    %c0_i32 = arith.constant 0 : i32
    %c0_i32_0 = arith.constant 0 : i32
    return %arg0, %c0_i32 : i32, i32
  }
}

</mosaic_0001>

<llo_original>
// kernel: time_mlp_apply.1
$region0: #{time_mlp_apply.1}
  #allocation0 [shape = 'u32[]', space=smem, size = 0x4, offset = 0x4, fixed_abs, tag = 'smem constant byte address 0x4 - core index']
  #allocation1 [shape = 'u32[144,128]{1,0:T(1,128)}', space=vmem, size = 0x12000, scoped, tag = 'internal scratch']
  %s0 = inlined_call_operand.vmem [shape: f32[8,1], index: 0, kind: input, shape index: {}]
  %s1 = inlined_call_operand.hbm [shape: bf16[32,32], index: 1, kind: input, shape index: {}]
  %s2 = inlined_call_operand.vmem [shape: f32[1,32], index: 2, kind: input, shape index: {}]
  %s3 = inlined_call_operand.hbm [shape: f32[8,32], index: 3, kind: output, shape index: {}]
  %s4 = sld [smem:[#allocation0]]
  $region26: #{time_mlp_apply.1} parent=0
    _
  %s6 = ssub.s32 1, %s4
  %s7 = scalar_select 0, %s6, %s4
  $region1: #{time_mlp_apply.1} parent=0
    #allocation2 [shape = 'u8[8192]{0}', space=vmem, size = 0x2000, scoped, tag = 'input window, operand 1, single buffered']
    #allocation3 [shape = 's32[1]{0}', space=sflag, size = 0x4, scoped, tag = 'scoped memory for time_mlp_apply.1']
    #allocation4 [shape = 's32[1]{0}', space=sflag, size = 0x4, scoped, tag = 'scoped memory for time_mlp_apply.1']
    #allocation5 [shape = 'u8[4096]{0}', space=vmem, size = 0x1000, scoped, tag = 'output window, operand 0, single buffered']
    %8 = vsyncpa [#allocation3], 0
    %9 = vsyncpa [#allocation4], 0
    // Predicated region
    $region2: #{time_mlp_apply.1} parent=1 // pred_check
      _
    $region3: #{time_mlp_apply.1} parent=1 // pred_check_branch
      %11 = sbr.rel (0) target = $region5
    $region4: #{time_mlp_apply.1} parent=1 // pred_region
      _
    $region5: #{time_mlp_apply.1} parent=1 // pred_fallthru
      _
    // Predicated region
    $region6: #{time_mlp_apply.1} parent=1 // pred_check
      _
    $region7: #{time_mlp_apply.1} parent=1 // pred_check_branch
      %13 = sbr.rel (0) target = $region9
    $region8: #{time_mlp_apply.1} parent=1 // pred_region
      %s15 = ssub.s32 256, 256
      %16 = vsyncadd [#allocation3], %s15
      %s17 = sshll.u32 [#allocation2], 4
      %s18 = int_to_ptr.vmem [resolvable:$true] %s17
      %23 = dma.hbm_to_vmem [thread:$0]  %s1, 256, %s18, [#allocation3], 64, 64, 4
    $region9: #{time_mlp_apply.1} parent=1 // pred_fallthru
      _
    // Predicated region
    $region10: #{time_mlp_apply.1} parent=1 // pred_check
      _
    $region11: #{time_mlp_apply.1} parent=1 // pred_check_branch
      %25 = sbr.rel (0) target = $region13
    $region12: #{time_mlp_apply.1} parent=1 // pred_region
      _
    $region13: #{time_mlp_apply.1} parent=1 // pred_fallthru
      _
    // Predicated region
    $region14: #{time_mlp_apply.1} parent=1 // pred_check
      _
    $region15: #{time_mlp_apply.1} parent=1 // pred_check_branch
      %27 = sbr.rel (0) target = $region17
    $region16: #{time_mlp_apply.1} parent=1 // pred_region
      %28 = dma.done [#allocation3], 256
    $region17: #{time_mlp_apply.1} parent=1 // pred_fallthru
      _
    %v30 = vlaneseq
    %v31 = vand.u32 %v30, 127
    %v32 = vcvt.s32.f32 %v31
    %v33 = vmul.f32 %v32, -0.6140227
    %v34 = vmul.f32 %v33, 1.442695
    %v35 = vpow.pop %v34
    %v36 = vld [vmem:[%s0] sm:$0xff]
    %38 = vset.pattern.permute.xlu0 0
    %39 = vperm.xlu0 %38, %v36
    %v40 = vpop.permute.xlu0 %39
    %v42 = vmul.f32 %v40, %v35
    %v43 = vand.u32 2147483647, %v42
    %vm44 = vcmp.le.f32.partialorder %v43, 0.7853982
    %vm45 = vcmp.lt.s32.totalorder %v42, 0
    %v46 = vand.u32 %v42, 2139095040
    %v47 = vshrl.u32 %v46, 23
    %v48 = vsub.s32 %v47, 127
    %v49 = vand.u32 2147483647, %v42
    %v50 = vand.u32 %v49, 8388607
    %v51 = vor.u32 %v50, 8388608
    %v52 = vsub.s32 0, %v51
    %v53 = vadd.s32 %v48, 1
    %vm54 = vcmp.gt.s32.totalorder %v53, 0
    %v55 = vsel %vm54, %v53, 0
    %v56 = vshrl.u32 %v55, 5
    %v57 = vand.u32 %v55, 31
    %v58 = vsub.s32 32, %v57
    %v59 = vshrl.u32 683565275, %v58
    %v60 = vshll.u32 683565275, %v57
    %v61 = vshrl.u32 2475754826, %v58
    %v62 = vor.u32 %v60, %v61
    %v63 = vshll.u32 2475754826, %v57
    %v64 = vshrl.u32 2131351028, %v58
    %v65 = vor.u32 %v63, %v64
    %v66 = vshll.u32 2131351028, %v57
    %v67 = vshrl.u32 2102212464, %v58
    %v68 = vor.u32 %v66, %v67
    %v69 = vshll.u32 2102212464, %v57
    %v70 = vshrl.u32 920167782, %v58
    %v71 = vor.u32 %v69, %v70
    %v72 = vshll.u32 920167782, %v57
    %v73 = vshrl.u32 1326507024, %v58
    %v74 = vor.u32 %v72, %v73
    %vm75 = vcmp.lt.s32.totalorder %v56, 1
    %vm76 = vcmp.lt.s32.totalorder %v56, 2
    %vm77 = vcmp.lt.s32.totalorder %v56, 3
    %vm78 = vcmp.lt.s32.totalorder %v56, 4
    %v79 = vsel %vm75, %v59, %v62
    %v80 = vsel %vm78, %v68, 2102212464
    %v81 = vsel %vm77, %v65, %v80
    %v82 = vsel %vm76, %v79, %v81
    %v83 = vsel %vm75, %v62, %v65
    %v84 = vsel %vm78, %v71, 920167782
    %v85 = vsel %vm77, %v68, %v84
    %v86 = vsel %vm76, %v83, %v85
    %v87 = vsel %vm75, %v65, %v68
    %v88 = vsel %vm78, %v74, 1326507024
    %v89 = vsel %vm77, %v71, %v88
    %v90 = vsel %vm76, %v87, %v89
    %v91 = vshll.u32 %v51, 8
    %v92 = vmul.u32.u64.compose %v91, %v90
    %v93 = vextract.low.u32 %v92
    %v94 = vextract.high.u32 %v92
    %v95 = vmul.u32.u64.compose %v91, %v86
    %v96 = vextract.low.u32 %v95
    %v97 = vextract.high.u32 %v95
    %v98 = vmul.u32 %v91, %v82
    %v99 = vadd.s32 %v94, %v96
    %vm100 = vc.u32 %v94, %v96
    %v101 = vadd.s32 %v97, 1
    %v102 = vsel %vm100, %v101, %v97
    %v103 = vadd.s32 %v98, %v102
    %v104 = vadd.s32 %v103, 536870912
    %v105 = vshrl.u32 %v104, 30
    %v106 = vshll.u32 %v105, 30
    %v107 = vsub.s32 %v103, %v106
    %vm108 = vcmp.lt.s32.totalorder %v107, 0
    %v109 = vsub.s32 0, %v107
    %v110 = vsel %vm108, %v109, %v107
    %v111 = vclz %v110
    %v112 = vsub.s32 %v111, 2
    %vm113 = vcmp.gt.s32.totalorder 0, %v112
    %v114 = vsel %vm113, 0, %v112
    %v115 = vsub.s32 32, %v114
    %v116 = vshll.u32 %v107, %v114
    %v117 = vshrl.u32 %v99, %v115
    %v118 = vor.u32 %v116, %v117
    %v119 = vsub.s32 4294967266, %v114
    %v120 = vadd.s32 %v119, 127
    %v121 = vshll.u32 %v120, 23
    %v122 = vor.u32 4788187, %v121
    %v123 = vand.u32 2147483647, %v122
    %v125 = vcvt.s32.f32 %v118
    %v126 = vmul.f32 %v125, %v123
    %v127 = vxor.u32 %v126, 2147483648
    %v128 = vsel %vm45, %v127, %v126
    %v129 = vsub.s32 4, %v105
    %v130 = vsel %vm45, %v129, %v105
    %v131 = vsel %vm44, %v42, %v128
    %v132 = vsel %vm44, 0, %v130
    %v133 = vcosq.f32.pop %v131
    %v134 = vsinq.f32.pop %v131
    %vm135 = vweird.f32 %v42
    %v136 = vadd.s32 %v132, 3
    %v137 = vand.u32 %v136, 3
    %vm138 = vcmp.lt.s32.totalorder %v137, 2
    %vm139 = vcmp.eq.s32.totalorder %v137, 0
    %v140 = vxor.u32 %v134, 2147483648
    %v141 = vsel %vm139, %v133, %v140
    %vm142 = vcmp.eq.s32.totalorder %v137, 2
    %v143 = vxor.u32 %v133, 2147483648
    %v144 = vsel %vm142, %v143, %v134
    %v145 = vsel %vm138, %v141, %v144
    %v146 = vsel %vm135, nan, %v145
    %v147 = vand.u32 2147483647, %v42
    %vm148 = vcmp.le.f32.partialorder %v147, 0.7853982
    %vm149 = vcmp.lt.s32.totalorder %v42, 0
    %v150 = vand.u32 %v42, 2139095040
    %v151 = vshrl.u32 %v150, 23
    %v152 = vsub.s32 %v151, 127
    %v153 = vand.u32 2147483647, %v42
    %v154 = vand.u32 %v153, 8388607
    %v155 = vor.u32 %v154, 8388608
    %v156 = vsub.s32 0, %v155
    %v157 = vadd.s32 %v152, 1
    %vm158 = vcmp.gt.s32.totalorder %v157, 0
    %v159 = vsel %vm158, %v157, 0
    %v160 = vshrl.u32 %v159, 5
    %v161 = vand.u32 %v159, 31
    %v162 = vsub.s32 32, %v161
    %v163 = vshrl.u32 683565275, %v162
    %v164 = vshll.u32 683565275, %v161
    %v165 = vshrl.u32 2475754826, %v162
    %v166 = vor.u32 %v164, %v165
    %v167 = vshll.u32 2475754826, %v161
    %v168 = vshrl.u32 2131351028, %v162
    %v169 = vor.u32 %v167, %v168
    %v170 = vshll.u32 2131351028, %v161
    %v171 = vshrl.u32 2102212464, %v162
    %v172 = vor.u32 %v170, %v171
    %v173 = vshll.u32 2102212464, %v161
    %v174 = vshrl.u32 920167782, %v162
    %v175 = vor.u32 %v173, %v174
    %v176 = vshll.u32 920167782, %v161
    %v177 = vshrl.u32 1326507024, %v162
    %v178 = vor.u32 %v176, %v177
    %vm179 = vcmp.lt.s32.totalorder %v160, 1
    %vm180 = vcmp.lt.s32.totalorder %v160, 2
    %vm181 = vcmp.lt.s32.totalorder %v160, 3
    %vm182 = vcmp.lt.s32.totalorder %v160, 4
    %v183 = vsel %vm179, %v163, %v166
    %v184 = vsel %vm182, %v172, 2102212464
    %v185 = vsel %vm181, %v169, %v184
    %v186 = vsel %vm180, %v183, %v185
    %v187 = vsel %vm179, %v166, %v169
    %v188 = vsel %vm182, %v175, 920167782
    %v189 = vsel %vm181, %v172, %v188
    %v190 = vsel %vm180, %v187, %v189
    %v191 = vsel %vm179, %v169, %v172
    %v192 = vsel %vm182, %v178, 1326507024
    %v193 = vsel %vm181, %v175, %v192
    %v194 = vsel %vm180, %v191, %v193
    %v195 = vshll.u32 %v155, 8
    %v196 = vmul.u32.u64.compose %v195, %v194
    %v197 = vextract.low.u32 %v196
    %v198 = vextract.high.u32 %v196
    %v199 = vmul.u32.u64.compose %v195, %v190
    %v200 = vextract.low.u32 %v199
    %v201 = vextract.high.u32 %v199
    %v202 = vmul.u32 %v195, %v186
    %v203 = vadd.s32 %v198, %v200
    %vm204 = vc.u32 %v198, %v200
    %v205 = vadd.s32 %v201, 1
    %v206 = vsel %vm204, %v205, %v201
    %v207 = vadd.s32 %v202, %v206
    %v208 = vadd.s32 %v207, 536870912
    %v209 = vshrl.u32 %v208, 30
    %v210 = vshll.u32 %v209, 30
    %v211 = vsub.s32 %v207, %v210
    %vm212 = vcmp.lt.s32.totalorder %v211, 0
    %v213 = vsub.s32 0, %v211
    %v214 = vsel %vm212, %v213, %v211
    %v215 = vclz %v214
    %v216 = vsub.s32 %v215, 2
    %vm217 = vcmp.gt.s32.totalorder 0, %v216
    %v218 = vsel %vm217, 0, %v216
    %v219 = vsub.s32 32, %v218
    %v220 = vshll.u32 %v211, %v218
    %v221 = vshrl.u32 %v203, %v219
    %v222 = vor.u32 %v220, %v221
    %v223 = vsub.s32 4294967266, %v218
    %v224 = vadd.s32 %v223, 127
    %v225 = vshll.u32 %v224, 23
    %v226 = vor.u32 4788187, %v225
    %v227 = vand.u32 2147483647, %v226
    %v229 = vcvt.s32.f32 %v222
    %v230 = vmul.f32 %v229, %v227
    %v231 = vxor.u32 %v230, 2147483648
    %v232 = vsel %vm149, %v231, %v230
    %v233 = vsub.s32 4, %v209
    %v234 = vsel %vm149, %v233, %v209
    %v235 = vsel %vm148, %v42, %v232
    %v236 = vsel %vm148, 0, %v234
    %v237 = vcosq.f32.pop %v235
    %v238 = vsinq.f32.pop %v235
    %vm239 = vweird.f32 %v42
    %v240 = vand.u32 %v236, 3
    %vm241 = vcmp.lt.s32.totalorder %v240, 2
    %vm242 = vcmp.eq.s32.totalorder %v240, 0
    %v243 = vxor.u32 %v238, 2147483648
    %v244 = vsel %vm242, %v237, %v243
    %vm245 = vcmp.eq.s32.totalorder %v240, 2
    %v246 = vxor.u32 %v237, 2147483648
    %v247 = vsel %vm245, %v246, %v238
    %v248 = vsel %vm241, %v244, %v247
    %v249 = vsel %vm239, nan, %v248
    %251 = vrot.lane.b32.xlu0 %v249, 16
    %v252 = vpop.permute.xlu0 %251
    %vm254 = vcmask 130048
    %v255 = vsel %vm254, %v146, %v252
    %v256 = vpack.c.bf16 %v255, %v255
    %v257 = vld [vmem:[#allocation2] sm:$0xf]
    %v258 = vld [vmem:[#allocation2 + $0x4] sm:$0xf]
    %v259 = vld [vmem:[#allocation2 + $0x8] sm:$0xf]
    %v260 = vld [vmem:[#allocation2 + $0xc] sm:$0xf]
    %v261 = vld [vmem:[%s2] sm:$0x1]
    %v263 = vlaneseq
    %v264 = vshrl.u32 %v263, 7
    %v265 = vsub.s32 0, %v264
    %v266 = vrot.slane %v261, %v265
    %v272 = vunpack.c.l.b16 %v257
    %v273 = vunpack.c.l.b16 %v258
    %v274 = vunpack.c.l.b16 %v259
    %v275 = vunpack.c.l.b16 %v260
    %v276 = vpack.c.b16 %v273, %v272
    %v277 = vpack.c.b16 %v275, %v274
    %vm280 = vcmask 261120
    %v282 = vsel %vm280, %v256, 0
    %284 = vmatprep.subr.bf16.mxu0 0
    %285 = vmatpush1.bf16.msra.mxu0 0
    %286 = vmatprep.subr.bf16.mxu0 0
    %287 = vmatpush1.bf16.msra.mxu0 0
    %288 = vmatprep.subr.bf16.mxu0 0
    %289 = vmatpush1.bf16.msra.mxu0 0
    %290 = vmatprep.subr.bf16.mxu0 0
    %291 = vmatpush1.bf16.msra.mxu0 0
    %292 = vmatprep.subr.bf16.mxu0 0
    %293 = vmatpush1.bf16.msra.mxu0 0
    %294 = vmatprep.subr.bf16.mxu0 0
    %295 = vmatpush1.bf16.msra.mxu0 0
    %296 = vmatprep.subr.bf16.mxu0 0
    %297 = vmatpush1.bf16.msra.mxu0 %v277
    %298 = vmatprep.subr.bf16.mxu0 0
    %299 = vmatpush1.bf16.msra.mxu0 %v276
    %300 = vmatprep.subr.bf16.mxu0 0
    %301 = vmatpush2.bf16.msra.mxu0 0
    %302 = vmatprep.subr.bf16.mxu0 0
    %303 = vmatpush2.bf16.msra.mxu0 0
    %304 = vmatprep.subr.bf16.mxu0 0
    %305 = vmatpush2.bf16.msra.mxu0 0
    %306 = vmatprep.subr.bf16.mxu0 0
    %307 = vmatpush2.bf16.msra.mxu0 0
    %308 = vmatprep.subr.bf16.mxu0 0
    %309 = vmatpush2.bf16.msra.mxu0 0
    %310 = vmatprep.subr.bf16.mxu0 0
    %311 = vmatpush2.bf16.msra.mxu0 0
    %312 = vmatprep.subr.bf16.mxu0 0
    %313 = vmatpush2.bf16.msra.mxu0 0
    %314 = vmatprep.subr.bf16.mxu0 0
    %315 = vmatpush2.bf16.msra.mxu0 0
    %316 = vmatprep.mubr.bf16.mxu0 0
    %317 = vmatmul.mubr.bf16.gmra.mxu0 %v282
    %v318 = vpop.f32.mrf.mxu0
    %v319 = vadd.f32 %v266, %v318
    %v320 = vpop.f32.mrf.mxu0
    %v321 = vpop.f32.mrf.mxu0
    %v322 = vpop.f32.mrf.mxu0
    %323 = vdwg.mxu0
    %v324 = vmul.f32 %v319, 0.2
    %v325 = vmax.f32 %v319, %v324
    %326 = vst.msk [vmem:[#allocation5] sm:$0xff] %vm280, %v325
    // Predicated region
    $region18: #{time_mlp_apply.1} parent=1 // pred_check
      _
    $region19: #{time_mlp_apply.1} parent=1 // pred_check_branch
      %328 = sbr.rel (0) target = $region21
    $region20: #{time_mlp_apply.1} parent=1 // pred_region
      %s330 = ssub.s32 128, 128
      %331 = vsyncadd [#allocation4], %s330
      %s333 = sshll.u32 [#allocation5], 4
      %s334 = int_to_ptr.vmem [resolvable:$true] %s333
      %336 = dma.vmem_to_hbm [thread:$0]  %s334, 128, %s3, [#allocation4]
    $region21: #{time_mlp_apply.1} parent=1 // pred_fallthru
      _
    // Predicated region
    $region22: #{time_mlp_apply.1} parent=1 // pred_check
      _
    $region23: #{time_mlp_apply.1} parent=1 // pred_check_branch
      %338 = sbr.rel (0) target = $region25
    $region24: #{time_mlp_apply.1} parent=1 // pred_region
      %339 = dma.done [#allocation4], 128
    $region25: #{time_mlp_apply.1} parent=1 // pred_fallthru
      _
    %340 = vsyncpa [#allocation3], 1
    %341 = vsyncpa [#allocation4], 1

</llo_original>
